<compile_context>
chip_gen: v5e
topology: v5e:2x2
jax: 0.10.0
libtpu: 0.0.40
codegen_flags: <defaults>
</compile_context>

<pallas_src>
import functools
import math

import jax
import jax.numpy as jnp
from jax.experimental import pallas as pl
from jax.experimental.pallas import tpu as pltpu

EPS = 1e-12                      # torch F.normalize default eps
_PLAN_BUDGET = 28 << 20          # modeled per-step VMEM we plan tiles against
_VMEM_LIMIT = 44 << 20           # scoped-VMEM limit requested (safe on v7x's 64 MiB)
_TARGET_ROWS = 512               # MXU M-dim target per grid step


# --------------------------------------------------------------------------
# Small planning helpers (pure Python, run at trace time)
# --------------------------------------------------------------------------
def _round_up(x: int, m: int) -> int:
    return (x + m - 1) // m * m


def _sublane_req(*dtypes) -> int:
    """Required multiple for a second-to-last block dim (8 f32 / 16 bf16 / 32 i8)."""
    return max(8 * (4 // jnp.dtype(d).itemsize) for d in dtypes)


def _multi_tensorcore() -> bool:
    """True on chips with >1 TensorCore per chip (v4 / v7x)."""
    try:
        kind = jax.devices()[0].device_kind.lower()
    except Exception:
        return False
    return any(tag in kind for tag in ("v4", "v7", "7x"))


def _choose_bt(batch: int, seq: int, sublane: int, target_rows: int) -> int:
    """Whole batches per row block. Bt*S must be sublane-aligned or cover all rows."""
    m = sublane // math.gcd(seq, sublane)
    if m >= batch:
        return batch                       # single block == full row extent (always legal)
    bt = max(1, target_rows // seq)
    bt = max(m, (bt // m) * m)             # keep Bt a multiple of the alignment step
    return min(bt, batch)                  # == batch -> full extent, also legal


def _maybe_split_rows(bt: int, batch: int, seq: int, sublane: int,
                      n_other_parallel: int) -> int:
    """On multi-TC chips, ensure >=2 parallel grid steps (only shrink if needed)."""
    if not _multi_tensorcore():
        return bt
    m = sublane // math.gcd(seq, sublane)
    nrb = pl.cdiv(batch, bt)
    if n_other_parallel * nrb >= 2 or bt <= m or m >= batch:
        return bt
    half = _round_up(pl.cdiv(batch, 2), m)
    return max(m, min(half, bt))


def _fit_tiles(batch, seq, p, sublane, budget, target_rows, need_fn):
    """Pick (Bt, Pt). Prefer full-P (weight fetched once); then tile P; else None."""
    m = sublane // math.gcd(seq, sublane)
    bt_big = _choose_bt(batch, seq, sublane, target_rows)
    bt_min = batch if m >= batch else m
    bts = [bt_big] if bt_big == bt_min else [bt_big, bt_min]
    for bt in bts:                                  # preference 1: full P extent
        if need_fn(bt * seq, p) <= budget:
            return bt, p
    for pt in (2048, 1024, 512, 256, 128):          # preference 2: 128-aligned P tiles
        if pt >= p:
            continue
        for bt in bts:
            if need_fn(bt * seq, pt) <= budget:
                return bt, pt
    return None


# --------------------------------------------------------------------------
# Kernels
# --------------------------------------------------------------------------
def _pooler_resident_kernel(x_ref, w_ref, b_ref, scale_ref, o_ref, *, seq_len):
    """Fast path: one grid step = one (row-block, P-tile); weight VMEM-resident.

    x_ref:     (Rt, H)    activations (caller dtype)
    w_ref:     (H, Pt)    projection weight (caller dtype)
    b_ref:     (1, Pt)    bias (f32)
    scale_ref: (1,) SMEM  exp(0.5 * log_scaler)
    o_ref:     (Rt, Pt)   output slab (Rt = Bt * seq_len)
    """
    y = jnp.dot(x_ref[...], w_ref[...], preferred_element_type=jnp.float32)
    y = jnp.tanh(y + b_ref[...])                       # f32 epilogue
    rt, pt = y.shape
    bt = rt // seq_len
    y3 = y.reshape(bt, seq_len, pt)                    # per-batch view, once per step
    sq = jnp.sum(y3 * y3, axis=1, keepdims=True)       # (Bt, 1, Pt) over the seq axis
    # F.normalize: y / max(||y||_2, eps)  ==  y * rsqrt(max(sq, eps^2)); fold scale in.
    inv = jax.lax.rsqrt(jnp.maximum(sq, EPS * EPS)) * scale_ref[0]
    o_ref[...] = (y3 * inv).reshape(rt, pt).astype(o_ref.dtype)


def _pooler_streamed_kernel(x_ref, w_ref, b_ref, scale_ref, o_ref, acc_ref, *, seq_len):
    """Fallback path: H streamed as innermost reduction axis into an f32 accumulator.

    x_ref: (Rt, Ht)   w_ref: (Ht, Pt)   b_ref: (1, Pt) f32   scale_ref: (1,) SMEM
    o_ref: (Rt, Pt)   acc_ref: (Rt, Pt) f32 scratch
    """
    k = pl.program_id(2)

    @pl.when(k == 0)
    def _init():
        acc_ref[...] = jnp.zeros_like(acc_ref)

    acc_ref[...] += jnp.dot(x_ref[...], w_ref[...], preferred_element_type=jnp.float32)

    @pl.when(k == pl.num_programs(2) - 1)
    def _finalize():
        y = jnp.tanh(acc_ref[...] + b_ref[...])
        rt, pt = y.shape
        bt = rt // seq_len
        y3 = y.reshape(bt, seq_len, pt)
        sq = jnp.sum(y3 * y3, axis=1, keepdims=True)
        inv = jax.lax.rsqrt(jnp.maximum(sq, EPS * EPS)) * scale_ref[0]
        o_ref[...] = (y3 * inv).reshape(rt, pt).astype(o_ref.dtype)


# --------------------------------------------------------------------------
# Wrapper
# --------------------------------------------------------------------------
@functools.partial(jax.jit, static_argnames=("force_streamed",))
def vod_pooler(hidden_states, attention_mask, weight, bias, log_scaler,
               *, force_streamed: bool = False):
    """Pallas implementation of VodPooler.forward (IdentityAgg / Linear / tanh / l2 / scale).

    hidden_states:  [B, S, H]  (f32 or bf16)
    attention_mask: [B, S]     (unused by IdentityAgg; kept for signature parity)
    weight:         [H, P]     (projection weight, transposed vs torch's [P, H])
    bias:           [P]
    log_scaler:     scalar     (nn.Parameter; output *= exp(0.5 * log_scaler))
    """
    del attention_mask  # IdentityAgg ignores the mask.
    B, S, H = hidden_states.shape
    P = weight.shape[1]
    out_dtype = hidden_states.dtype

    # Wrapper-side flatten (metadata-only): kernel sees 2-D sublane/lane-dense blocks.
    x2 = hidden_states.reshape(B * S, H)
    bias2 = bias.reshape(1, P).astype(jnp.float32)
    scale = jnp.exp(0.5 * jnp.asarray(log_scaler, dtype=jnp.float32)).reshape(1)

    x_b = jnp.dtype(hidden_states.dtype).itemsize
    w_b = jnp.dtype(weight.dtype).itemsize
    o_b = jnp.dtype(out_dtype).itemsize
    sub = _sublane_req(hidden_states.dtype, out_dtype)
    kern_args = (x2, weight, bias2, scale)

    # ---------------- fast path: weight resident in VMEM, no reduction axis ----------
    def fast_need(rt, pt):
        return (2 * rt * H * x_b        # x block, double buffered
                + 2 * H * pt * w_b      # weight block, double buffered
                + 2 * rt * pt * o_b     # output block, double buffered
                + 2 * pt * 4            # bias block
                + 2 * rt * pt * 4)      # f32 epilogue intermediates allowance

    plan = None if force_streamed else _fit_tiles(B, S, P, sub, _PLAN_BUDGET,
                                                  _TARGET_ROWS, fast_need)
    if plan is not None:
        bt, pt = plan
        npt = pl.cdiv(P, pt)
        bt = _maybe_split_rows(bt, B, S, sub, npt)
        rt = bt * S
        nrb = pl.cdiv(B, bt)
        out2 = pl.pallas_call(
            functools.partial(_pooler_resident_kernel, seq_len=S),
            out_shape=jax.ShapeDtypeStruct((B * S, P), out_dtype),
            grid_spec=pltpu.PrefetchScalarGridSpec(
                num_scalar_prefetch=0,
                # P tiles OUTER so the weight block index is constant across the
                # inner row sweep -> each weight tile is DMA'd exactly once.
                grid=(npt, nrb),
                in_specs=[
                    pl.BlockSpec((rt, H), lambda pj, ri: (ri, 0)),
                    pl.BlockSpec((H, pt), lambda pj, ri: (0, pj)),
                    pl.BlockSpec((1, pt), lambda pj, ri: (0, pj)),
                    pl.BlockSpec(memory_space=pltpu.MemorySpace.SMEM),
                ],
                out_specs=pl.BlockSpec((rt, pt), lambda pj, ri: (ri, pj)),
            ),
            compiler_params=pltpu.CompilerParams(
                dimension_semantics=("parallel", "parallel"),
                vmem_limit_bytes=_VMEM_LIMIT,
            ),
        )(*kern_args)
        return out2.reshape(B, S, P)

    # ---------------- fallback path: stream H into an f32 accumulator ----------------
    ht = 512 if H > 512 else _round_up(H, 128)
    hp = _round_up(H, ht)                       # pad K up to a multiple of the K tile

    def stream_need(rt, pt):
        return (2 * rt * ht * x_b + 2 * ht * pt * w_b + 2 * rt * pt * o_b
                + 2 * pt * 4
                + rt * pt * 4                   # acc scratch (single buffer)
                + 2 * rt * pt * 4)              # f32 epilogue intermediates allowance

    splan = _fit_tiles(B, S, P, sub, _PLAN_BUDGET, _TARGET_ROWS, stream_need)
    if splan is None:                           # absurd shapes: smallest legal tiles
        m = sub // math.gcd(S, sub)
        splan = (B if m >= B else m, 128 if P > 128 else P)
    bt, pt = splan
    npt = pl.cdiv(P, pt)
    bt = _maybe_split_rows(bt, B, S, sub, npt)
    rt = bt * S
    nrb = pl.cdiv(B, bt)
    nkt = hp // ht

    xs, ws = x2, weight
    if hp != H:
        # Rare (fallback path with unaligned huge H): zero K-padding is math-neutral.
        xs = jnp.pad(x2, ((0, 0), (0, hp - H)))
        ws = jnp.pad(weight, ((0, hp - H), (0, 0)))

    out2 = pl.pallas_call(
        functools.partial(_pooler_streamed_kernel, seq_len=S),
        out_shape=jax.ShapeDtypeStruct((B * S, P), out_dtype),
        grid_spec=pltpu.PrefetchScalarGridSpec(
            num_scalar_prefetch=0,
            grid=(npt, nrb, nkt),               # K innermost (reduction)
            in_specs=[
                pl.BlockSpec((rt, ht), lambda pj, ri, ki: (ri, ki)),
                pl.BlockSpec((ht, pt), lambda pj, ri, ki: (ki, pj)),
                pl.BlockSpec((1, pt), lambda pj, ri, ki: (0, pj)),
                pl.BlockSpec(memory_space=pltpu.MemorySpace.SMEM),
            ],
            out_specs=pl.BlockSpec((rt, pt), lambda pj, ri, ki: (ri, pj)),
            scratch_shapes=[pltpu.VMEM((rt, pt), jnp.float32)],
        ),
        compiler_params=pltpu.CompilerParams(
            dimension_semantics=("parallel", "parallel", "arbitrary"),
            vmem_limit_bytes=_VMEM_LIMIT,
        ),
    )(xs, ws, bias2, scale)
    return out2.reshape(B, S, P)


# --------------------------------------------------------------------------
# Pure-JAX reference mirroring the PyTorch forward
# --------------------------------------------------------------------------
def vod_pooler_ref(hidden_states, attention_mask, weight, bias, log_scaler):
    del attention_mask
    y = jnp.tanh(hidden_states @ weight + bias)                       # Linear + tanh
    denom = jnp.maximum(jnp.sqrt(jnp.sum(y * y, axis=1, keepdims=True)), EPS)
    return (y / denom) * jnp.exp(0.5 * log_scaler)                    # normalize + scale


# --------------------------------------------------------------------------
# Self-test
# --------------------------------------------------------------------------
if __name__ == "__main__":
    key = jax.random.PRNGKey(0)

    # --- Test 1: main config (fast path, f32) -------------------------------
    B, S, H, P = 2, 8, 32, 32
    k_x, k_w, k_b = jax.random.split(key, 3)
    hs = jax.random.normal(k_x, (B, S, H), dtype=jnp.float32)
    mask = jnp.ones((B, S), dtype=jnp.int32)
    w = jax.random.normal(k_w, (H, P), dtype=jnp.float32) / jnp.sqrt(H)
    b = jax.random.normal(k_b, (P,), dtype=jnp.float32) * 0.01
    log_scaler = jnp.log(jnp.float32(2.0))                  # config.scaler = 2.0

    out = jax.block_until_ready(vod_pooler(hs, mask, w, b, log_scaler))
    ref = vod_pooler_ref(hs, mask, w, b, log_scaler)
    assert out.shape == (B, S, P)
    assert jnp.allclose(out, ref, atol=1e-5, rtol=1e-5), "fast path f32 mismatch"

    # --- Test 2: bf16 inputs (fast path, f32 epilogue inside the kernel) ----
    hs_bf, w_bf = hs.astype(jnp.bfloat16), w.astype(jnp.bfloat16)
    out_bf = jax.block_until_ready(vod_pooler(hs_bf, mask, w_bf, b, log_scaler))
    ref_bf = vod_pooler_ref(hs_bf.astype(jnp.float32), mask,
                            w_bf.astype(jnp.float32), b, log_scaler)
    assert out_bf.shape == (B, S, P) and out_bf.dtype == jnp.bfloat16
    assert jnp.allclose(out_bf.astype(jnp.float32), ref_bf, atol=3e-2, rtol=3e-2), \
        "fast path bf16 mismatch"

    # --- Test 3: streamed-H fallback path (forced), multi-K, unaligned P ----
    B3, S3, H3, P3 = 3, 8, 1024, 160
    k_x3, k_w3, k_b3 = jax.random.split(jax.random.PRNGKey(1), 3)
    hs3 = jax.random.normal(k_x3, (B3, S3, H3), dtype=jnp.float32)
    mask3 = jnp.ones((B3, S3), dtype=jnp.int32)
    w3 = jax.random.normal(k_w3, (H3, P3), dtype=jnp.float32) / jnp.sqrt(H3)
    b3 = jax.random.normal(k_b3, (P3,), dtype=jnp.float32) * 0.01
    out3 = jax.block_until_ready(
        vod_pooler(hs3, mask3, w3, b3, log_scaler, force_streamed=True))
    ref3 = vod_pooler_ref(hs3, mask3, w3, b3, log_scaler)
    assert out3.shape == (B3, S3, P3)
    assert jnp.allclose(out3, ref3, atol=1e-2, rtol=1e-2), "streamed path mismatch"

    # --- Test 4: batch not divisible by the row block (partial last block) --
    B4, S4, H4, P4 = 70, 8, 128, 128
    k_x4, k_w4, k_b4 = jax.random.split(jax.random.PRNGKey(2), 3)
    hs4 = jax.random.normal(k_x4, (B4, S4, H4), dtype=jnp.float32)
    mask4 = jnp.ones((B4, S4), dtype=jnp.int32)
    w4 = jax.random.normal(k_w4, (H4, P4), dtype=jnp.float32) / jnp.sqrt(H4)
    b4 = jax.random.normal(k_b4, (P4,), dtype=jnp.float32) * 0.01
    out4 = jax.block_until_ready(vod_pooler(hs4, mask4, w4, b4, log_scaler))
    ref4 = vod_pooler_ref(hs4, mask4, w4, b4, log_scaler)
    assert out4.shape == (B4, S4, P4)
    assert jnp.allclose(out4, ref4, atol=1e-3, rtol=1e-3), "partial-block mismatch"

    print("KERNEL_OK")
</pallas_src>

<mosaic_0001>
module attributes {stable_mosaic.version = 11 : i64} {
  func.func @_pooler_resident_kernel(%arg0: i32, %arg1: i32, %arg2: memref<16x32xf32, #tpu.memory_space<vmem>>, %arg3: memref<32x32xf32, #tpu.memory_space<vmem>>, %arg4: memref<1x32xf32, #tpu.memory_space<vmem>>, %arg5: memref<1xf32, #tpu.memory_space<smem>>, %arg6: memref<16x32xf32, #tpu.memory_space<vmem>>) attributes {dimension_semantics = [#tpu.dimension_semantics<parallel>, #tpu.dimension_semantics<parallel>], iteration_bounds = array<i64: 1, 1>, scalar_prefetch = 0 : i64, scratch_operands = 0 : i64, tpu.core_type = #tpu.core_type<tc>, window_params = [{transform_indices = @transform_0, window_bounds = array<i64: 16, 32>}, {transform_indices = @transform_1, window_bounds = array<i64: 32, 32>}, {transform_indices = @transform_2, window_bounds = array<i64: 1, 32>}, {transform_indices = @transform_3, window_bounds = array<i64: 1>}, {transform_indices = @transform_4, window_bounds = array<i64: 16, 32>}]} {
    %c0 = arith.constant 0 : index
    %c0_0 = arith.constant 0 : index
    %0 = vector.load %arg2[%c0, %c0_0] : memref<16x32xf32, #tpu.memory_space<vmem>>, vector<16x32xf32>
    %c0_1 = arith.constant 0 : index
    %c0_2 = arith.constant 0 : index
    %1 = vector.load %arg3[%c0_1, %c0_2] : memref<32x32xf32, #tpu.memory_space<vmem>>, vector<32x32xf32>
    %cst = arith.constant dense<0.000000e+00> : vector<16x32xf32>
    %2 = tpu.matmul %0, %1, %cst {dimension_numbers = #tpu.dot_dimension_numbers<[1], [0], [0], [1], [0, 0, 1, 1], [], []>} : vector<16x32xf32>, vector<32x32xf32>, vector<16x32xf32> -> vector<16x32xf32>
    %c0_3 = arith.constant 0 : index
    %c0_4 = arith.constant 0 : index
    %3 = vector.load %arg4[%c0_3, %c0_4] : memref<1x32xf32, #tpu.memory_space<vmem>>, vector<1x32xf32>
    %4 = vector.broadcast %3 : vector<1x32xf32> to vector<16x32xf32>
    %5 = arith.addf %2, %4 : vector<16x32xf32>
    %6 = math.tanh %5 : vector<16x32xf32>
    %7 = vector.shape_cast %6 : vector<16x32xf32> to vector<2x8x32xf32>
    %8 = arith.mulf %7, %7 : vector<2x8x32xf32>
    %cst_5 = arith.constant dense<0.000000e+00> : vector<2x32xf32>
    %9 = vector.multi_reduction <add>, %8, %cst_5 [1] : vector<2x8x32xf32> to vector<2x32xf32>
    %10 = vector.shape_cast %9 : vector<2x32xf32> to vector<2x1x32xf32>
    %cst_6 = arith.constant 1.000000e-24 : f32
    %11 = vector.broadcast %cst_6 : f32 to vector<2x1x32xf32>
    %12 = arith.maximumf %10, %11 : vector<2x1x32xf32>
    %13 = math.rsqrt %12 : vector<2x1x32xf32>
    %c0_7 = arith.constant 0 : index
    %14 = memref.load %arg5[%c0_7] : memref<1xf32, #tpu.memory_space<smem>>
    %15 = vector.broadcast %14 : f32 to vector<2x1x32xf32>
    %16 = arith.mulf %13, %15 : vector<2x1x32xf32>
    %17 = vector.broadcast %16 : vector<2x1x32xf32> to vector<2x8x32xf32>
    %18 = arith.mulf %7, %17 : vector<2x8x32xf32>
    %19 = vector.shape_cast %18 : vector<2x8x32xf32> to vector<16x32xf32>
    %c0_8 = arith.constant 0 : index
    %c0_9 = arith.constant 0 : index
    %20 = vector.load %arg6[%c0_8, %c0_9] : memref<16x32xf32, #tpu.memory_space<vmem>>, vector<16x32xf32>
    tpu.vector_store %arg6[%c0_8, %c0_9], %19 {strides = array<i32>} : memref<16x32xf32, #tpu.memory_space<vmem>>, vector<16x32xf32>,
    return
  }
  func.func @transform_0(%arg0: i32, %arg1: i32) -> (i32, i32) {
    %c0_i32 = arith.constant 0 : i32
    %c0_i32_0 = arith.constant 0 : i32
    return %arg1, %c0_i32 : i32, i32
  }
  func.func @transform_1(%arg0: i32, %arg1: i32) -> (i32, i32) {
    %c0_i32 = arith.constant 0 : i32
    %c0_i32_0 = arith.constant 0 : i32
    return %c0_i32, %arg0 : i32, i32
  }
  func.func @transform_2(%arg0: i32, %arg1: i32) -> (i32, i32) {
    %c0_i32 = arith.constant 0 : i32
    %c0_i32_0 = arith.constant 0 : i32
    return %c0_i32, %arg0 : i32, i32
  }
  func.func @transform_3(%arg0: i32, %arg1: i32) -> i32 {
    %c0_i32 = arith.constant 0 : i32
    %c0_i32_0 = arith.constant 0 : i32
    return %c0_i32 : i32
  }
  func.func @transform_4(%arg0: i32, %arg1: i32) -> (i32, i32) {
    %c0_i32 = arith.constant 0 : i32
    return %arg1, %arg0 : i32, i32
  }
}

</mosaic_0001>

<llo_original>
// kernel: vod_pooler.1
$region0: #{vod_pooler.1}
  #allocation0 [shape = 'u32[]', space=smem, size = 0x4, offset = 0x4, fixed_abs, tag = 'smem constant byte address 0x4 - core index']
  #allocation1 [shape = 'u32[72,128]{1,0:T(1,128)}', space=vmem, size = 0x9000, scoped, tag = 'internal scratch']
  #allocation2 [shape = 'f32[1]{0:T(128)S(6)}', space=smem, size = 0x200, scoped, tag = 'scoped memory for vod_pooler.1']
  %s0 = inlined_call_operand.hbm [shape: f32[16,32], index: 0, kind: input, shape index: {}]
  %s1 = inlined_call_operand.hbm [shape: f32[32,32], index: 1, kind: input, shape index: {}]
  %s2 = inlined_call_operand.vmem [shape: f32[1,32], index: 2, kind: input, shape index: {}]
  %s3 = inlined_call_operand.<no memory space> [shape: f32[1], index: 3, kind: input, shape index: {}]
  %s4 = inlined_call_operand.hbm [shape: f32[16,32], index: 4, kind: output, shape index: {}]
  %s5 = sld [smem:[#allocation0]]
  $region34: #{vod_pooler.1} parent=0
    _
  %s7 = ssub.s32 1, %s5
  %s8 = scalar_select 0, %s7, %s5
  %9 = sst [smem:[#allocation2]] %s3
  $region1: #{vod_pooler.1} parent=0
    #allocation3 [shape = 'u8[8192]{0}', space=vmem, size = 0x2000, scoped, tag = 'input window, operand 0, single buffered']
    #allocation4 [shape = 's32[1]{0}', space=sflag, size = 0x4, scoped, tag = 'scoped memory for vod_pooler.1']
    #allocation5 [shape = 's32[1]{0}', space=sflag, size = 0x4, scoped, tag = 'scoped memory for vod_pooler.1']
    #allocation6 [shape = 'u8[16384]{0}', space=vmem, size = 0x4000, scoped, tag = 'input window, operand 1, single buffered']
    #allocation7 [shape = 's32[1]{0}', space=sflag, size = 0x4, scoped, tag = 'scoped memory for vod_pooler.1']
    #allocation8 [shape = 'u8[8192]{0}', space=vmem, size = 0x2000, scoped, tag = 'output window, operand 0, single buffered']
    %10 = vsyncpa [#allocation4], 0
    %11 = vsyncpa [#allocation7], 0
    %12 = vsyncpa [#allocation5], 0
    // Predicated region
    $region2: #{vod_pooler.1} parent=1 // pred_check
      _
    $region3: #{vod_pooler.1} parent=1 // pred_check_branch
      %14 = sbr.rel (0) target = $region5
    $region4: #{vod_pooler.1} parent=1 // pred_region
      %16 = vsyncadd [#allocation4], 0
      %s17 = sshll.u32 %s0, 4
      %s18 = int_to_ptr.hbm [resolvable:$true] %s17
      %s19 = sshll.u32 [#allocation3], 4
      %s20 = int_to_ptr.vmem [resolvable:$true] %s19
      %25 = dma.hbm_to_vmem [thread:$0]  %s18, 256, %s20, [#allocation4], 128, 128, 8
    $region5: #{vod_pooler.1} parent=1 // pred_fallthru
      _
    // Predicated region
    $region6: #{vod_pooler.1} parent=1 // pred_check
      _
    $region7: #{vod_pooler.1} parent=1 // pred_check_branch
      %27 = sbr.rel (0) target = $region9
    $region8: #{vod_pooler.1} parent=1 // pred_region
      %29 = vsyncadd [#allocation7], 0
      %s30 = sshll.u32 %s1, 4
      %s31 = int_to_ptr.hbm [resolvable:$true] %s30
      %s32 = sshll.u32 [#allocation6], 4
      %s33 = int_to_ptr.vmem [resolvable:$true] %s32
      %38 = dma.hbm_to_vmem [thread:$0]  %s31, 512, %s33, [#allocation7], 128, 128, 8
    $region9: #{vod_pooler.1} parent=1 // pred_fallthru
      _
    // Predicated region
    $region10: #{vod_pooler.1} parent=1 // pred_check
      _
    $region11: #{vod_pooler.1} parent=1 // pred_check_branch
      %40 = sbr.rel (0) target = $region13
    $region12: #{vod_pooler.1} parent=1 // pred_region
      _
    $region13: #{vod_pooler.1} parent=1 // pred_fallthru
      _
    // Predicated region
    $region14: #{vod_pooler.1} parent=1 // pred_check
      _
    $region15: #{vod_pooler.1} parent=1 // pred_check_branch
      %42 = sbr.rel (0) target = $region17
    $region16: #{vod_pooler.1} parent=1 // pred_region
      _
    $region17: #{vod_pooler.1} parent=1 // pred_fallthru
      _
    // Predicated region
    $region18: #{vod_pooler.1} parent=1 // pred_check
      _
    $region19: #{vod_pooler.1} parent=1 // pred_check_branch
      %44 = sbr.rel (0) target = $region21
    $region20: #{vod_pooler.1} parent=1 // pred_region
      %46 = dma.done [#allocation4], 256
    $region21: #{vod_pooler.1} parent=1 // pred_fallthru
      _
    // Predicated region
    $region22: #{vod_pooler.1} parent=1 // pred_check
      _
    $region23: #{vod_pooler.1} parent=1 // pred_check_branch
      %48 = sbr.rel (0) target = $region25
    $region24: #{vod_pooler.1} parent=1 // pred_region
      %50 = dma.done [#allocation7], 512
    $region25: #{vod_pooler.1} parent=1 // pred_fallthru
      _
    %v51 = vld [vmem:[#allocation3] sm:$0xff]
    %v52 = vld [vmem:[#allocation3 + $0x8] sm:$0xff]
    %v53 = vld [vmem:[#allocation6] sm:$0xff]
    %v54 = vld [vmem:[#allocation6 + $0x8] sm:$0xff]
    %v55 = vld [vmem:[#allocation6 + $0x10] sm:$0xff]
    %v56 = vld [vmem:[#allocation6 + $0x18] sm:$0xff]
    %v57 = vld [vmem:[%s2] sm:$0x1]
    %v59 = vperm.slane %v57, 0
    %vm61 = vcmask 261120
    %v63 = vsel %vm61, %v51, 0
    %v66 = vsel %vm61, %v52, 0
    %68 = vmatpush.msra.mxu0 0.0
    %69 = vmatpush.msra.mxu0 0.0
    %70 = vmatpush.msra.mxu0 0.0
    %71 = vmatpush.msra.mxu0 0.0
    %72 = vmatpush.msra.mxu0 0.0
    %73 = vmatpush.msra.mxu0 0.0
    %74 = vmatpush.msra.mxu0 0.0
    %75 = vmatpush.msra.mxu0 0.0
    %76 = vmatpush.msra.mxu0 0.0
    %77 = vmatpush.msra.mxu0 0.0
    %78 = vmatpush.msra.mxu0 0.0
    %79 = vmatpush.msra.mxu0 0.0
    %80 = vmatpush.msra.mxu0 %v56
    %81 = vmatpush.msra.mxu0 %v55
    %82 = vmatpush.msra.mxu0 %v54
    %83 = vmatpush.msra.mxu0 %v53
    %84 = vmatmul.f32.gmra.mxu0 %v63
    %v85 = vpop.f32.mrf.mxu0
    %v86 = vadd.f32 %v59, %v85
    %87 = vmatmul.f32.gmra.mxu0 %v66
    %v88 = vpop.f32.mrf.mxu0
    %v89 = vadd.f32 %v59, %v88
    %90 = vdwg.mxu0
    %v91 = vtanh.pop %v86
    %v92 = vtanh.pop %v89
    %v93 = vmul.f32 %v91, %v91
    %v94 = vmul.f32 %v92, %v92
    %v95 = vsel %vm61, %v93, 0.0
    %v96 = vrot.slane %v95, 4
    %v97 = vadd.f32 %v95, %v96
    %v98 = vrot.slane %v97, 2
    %v99 = vadd.f32 %v97, %v98
    %v100 = vrot.slane %v99, 1
    %v101 = vadd.f32 %v99, %v100
    %v102 = vsel %vm61, %v94, 0.0
    %v103 = vrot.slane %v102, 4
    %v104 = vadd.f32 %v102, %v103
    %v105 = vrot.slane %v104, 2
    %v106 = vadd.f32 %v104, %v105
    %v107 = vrot.slane %v106, 1
    %v108 = vadd.f32 %v106, %v107
    %v109 = vmax.f32 %v101, 1e-24
    %v110 = vmax.f32 %v108, 1e-24
    %v111 = vrsqrt.pop %v109
    %v112 = vmul.f32 %v111, %v109
    %v113 = vmul.f32 %v112, %v111
    %v114 = vmul.f32 0.5, %v113
    %v115 = vsub.f32 1.5, %v114
    %v116 = vmul.f32 %v111, %v115
    %vm117 = vweird.f32 %v109
    %vm118 = vweird.f32 %v111
    %vm119 = vmor %vm117, %vm118
    %v120 = vsel %vm119, %v111, %v116
    %v121 = vrsqrt.pop %v110
    %v122 = vmul.f32 %v121, %v110
    %v123 = vmul.f32 %v122, %v121
    %v124 = vmul.f32 0.5, %v123
    %v125 = vsub.f32 1.5, %v124
    %v126 = vmul.f32 %v121, %v125
    %vm127 = vweird.f32 %v110
    %vm128 = vweird.f32 %v121
    %vm129 = vmor %vm127, %vm128
    %v130 = vsel %vm129, %v121, %v126
    %s131 = sld [smem:[#allocation2]]
    %v132 = vstv %s131
    %v133 = vmul.f32 %v120, %v132
    %v134 = vmul.f32 %v130, %v132
    %v135 = vmul.f32 %v91, %v133
    %v136 = vmul.f32 %v92, %v134
    %137 = vst.msk [vmem:[#allocation8] sm:$0xff] %vm61, %v135
    %138 = vst.msk [vmem:[#allocation8 + $0x8] sm:$0xff] %vm61, %v136
    // Predicated region
    $region26: #{vod_pooler.1} parent=1 // pred_check
      _
    $region27: #{vod_pooler.1} parent=1 // pred_check_branch
      %140 = sbr.rel (0) target = $region29
    $region28: #{vod_pooler.1} parent=1 // pred_region
      %142 = vsyncadd [#allocation5], 0
      %s143 = sshll.u32 [#allocation8], 4
      %s144 = int_to_ptr.vmem [resolvable:$true] %s143
      %s145 = sshll.u32 %s4, 4
      %s146 = int_to_ptr.hbm [resolvable:$true] %s145
      %151 = dma.vmem_to_hbm [thread:$0]  %s144, 256, %s146, [#allocation5], 128, 128, 8
    $region29: #{vod_pooler.1} parent=1 // pred_fallthru
      _
    // Predicated region
    $region30: #{vod_pooler.1} parent=1 // pred_check
      _
    $region31: #{vod_pooler.1} parent=1 // pred_check_branch
      %153 = sbr.rel (0) target = $region33
    $region32: #{vod_pooler.1} parent=1 // pred_region
      %155 = dma.done [#allocation5], 256
    $region33: #{vod_pooler.1} parent=1 // pred_fallthru
      _
    %156 = vsyncpa [#allocation4], 1
    %157 = vsyncpa [#allocation7], 1
    %158 = vsyncpa [#allocation5], 1

</llo_original>
